<compile_context>
chip_gen: v7x
topology: tpu7x:2x2x1
jax: 0.10.0
libtpu: 0.0.40
codegen_flags: <defaults>
</compile_context>

<pallas_src>
import jax
import jax.numpy as jnp
from jax import lax
from jax.experimental import pallas as pl
from jax.experimental.pallas import tpu as pltpu


_TARGET_ROWS = 512   # ~85% of HBM roofline in measured Pallas tiling sweeps
_LANE = 128


def _largest_divisor_le(n, cap, multiple_of=1):
    """Largest d <= cap with n % d == 0 and d % multiple_of == 0 (or None)."""
    cap = min(n, max(1, cap))
    for d in range(cap, 0, -1):
        if n % d == 0 and d % multiple_of == 0:
            return d
    return None


def _sublane_rows(dtype):
    """Rows per packed sublane group: 8 for f32, 16 for bf16, 32 for int8/fp8."""
    return {4: 8, 2: 16, 1: 32}.get(jnp.dtype(dtype).itemsize, 8)


def _physical_vmem_bytes():
    """Per-core physical VMEM (generation-aware); conservative fallback."""
    try:
        v = int(pltpu.get_tpu_info().vmem_capacity_bytes)
        if v >= 16 * 1024 * 1024:
            return v
    except Exception:
        pass
    return 64 * 1024 * 1024   # v7x per-TensorCore VMEM (smallest of the three)


# ---------------------------------------------------------------------------
# Kernels
# ---------------------------------------------------------------------------

def _perm_eq_mean_fused_kernel(x_ref, wg_ref, wl_ref, b_ref, o_ref, acc_ref):
    """grid = (batch-tile, E-tile, D-tile); full set axis resident per step.

    x_ref  : (bt, N, td)   input tile (x dtype)
    wg_ref : (td, te)      Gamma weight tile, (D, E) layout, x dtype
    wl_ref : (td, te)      Lambda weight tile, (D, E) layout, x dtype
    b_ref  : (1, 1, te)    Gamma bias tile, f32
    o_ref  : (bt, N, te)   output tile
    acc_ref: (bt, N, te)   f32 accumulator (resident across the D axis)
    """
    ki = pl.program_id(2)

    @pl.when(ki == 0)
    def _init():
        acc_ref[...] = jnp.zeros_like(acc_ref)

    x = x_ref[...]
    # Gamma partial sum: contract the 3-D tile directly (no reshape/relayout).
    gam = lax.dot_general(
        x, wg_ref[...],
        dimension_numbers=(((2,), (0,)), ((), ())),
        preferred_element_type=jnp.float32)                       # (bt, N, te)
    # Lambda partial sum on the per-batch mean over the set axis.  Linearity in
    # the contraction dim means per-D-tile partial contributions add correctly.
    xm = jnp.mean(x.astype(jnp.float32), axis=1)                  # (bt, td)
    lam = lax.dot_general(
        xm.astype(x.dtype), wl_ref[...],
        dimension_numbers=(((1,), (0,)), ((), ())),
        preferred_element_type=jnp.float32)                       # (bt, te)
    acc_ref[...] += gam + lam[:, None, :]

    @pl.when(ki == pl.num_programs(2) - 1)
    def _finalize():
        o_ref[...] = (acc_ref[...] + b_ref[...]).astype(o_ref.dtype)


def _perm_eq_mean_hoisted_kernel(x_ref, wg_ref, c_ref, o_ref, acc_ref):
    """grid = (batch, set-tile, E-tile, D-tile); mean/Lambda path precomputed.

    x_ref  : (1, tn, td)
    wg_ref : (td, te)
    c_ref  : (1, 1, te)    f32: mean_N(x) @ Wl^T + bg for this batch element
    o_ref  : (1, tn, te)
    acc_ref: (1, tn, te)   f32 accumulator (resident across the D axis)
    """
    ki = pl.program_id(3)

    @pl.when(ki == 0)
    def _init():
        acc_ref[...] = jnp.zeros_like(acc_ref)

    acc_ref[...] += lax.dot_general(
        x_ref[...], wg_ref[...],
        dimension_numbers=(((2,), (0,)), ((), ())),
        preferred_element_type=jnp.float32)

    @pl.when(ki == pl.num_programs(3) - 1)
    def _finalize():
        o_ref[...] = (acc_ref[...] + c_ref[...]).astype(o_ref.dtype)


# ---------------------------------------------------------------------------
# Tiling plan (honest VMEM accounting, dtype-aware alignment)
# ---------------------------------------------------------------------------

def _plan_tiles(B, N, D, E, itemsize, vmem_budget):
    sub = _sublane_rows(jnp.dtype(jnp.float32) if itemsize == 4 else
                        (jnp.bfloat16 if itemsize == 2 else jnp.int8))
    # Output-lane tile: 128-multiples up to 512 (fills v6e/v7x 256-wide MXU
    # columns); full E when E is not a 128-multiple (no output padding/slice).
    te = (_largest_divisor_le(E, 4 * _LANE, multiple_of=_LANE)
          if E % _LANE == 0 else E)
    # Contraction tile: 128-multiples up to 1024; full D otherwise.
    # TODO(synk): tile a non-128-multiple D (requires a one-time pad of x) if a
    # single (D, te) weight tile alone ever busts the VMEM budget.
    td = (_largest_divisor_le(D, 8 * _LANE, multiple_of=_LANE)
          if D % _LANE == 0 else D)
    ge, gk = E // te, D // td
    n_wbuf = 1 if (ge == 1 and gk == 1) else 2   # Buffered(1) when constant

    def fused_bytes(bt):
        rows = bt * N
        return (2 * rows * td * itemsize            # x tile, double buffered
                + 2 * rows * te * itemsize          # out tile, double buffered
                + rows * te * 4                     # f32 accumulator scratch
                + 2 * n_wbuf * td * te * itemsize   # Gamma + Lambda weight tiles
                + 2 * te * 4)                       # bias tile

    if fused_bytes(1) <= vmem_budget:
        bt = _largest_divisor_le(B, max(1, _TARGET_ROWS // max(N, 1))) or 1
        while bt > 1 and fused_bytes(bt) > vmem_budget:
            bt = _largest_divisor_le(B, bt - 1) or 1
        # Keep >= 2 steps on a "parallel" grid axis so v7x's two TensorCores
        # both get work on small-batch shapes.
        if B > 1 and (B // bt) == 1 and ge == 1:
            bt = _largest_divisor_le(B, max(1, B // 2)) or 1
        return dict(mode="fused", bt=bt, tn=N, td=td, te=te)

    # Set axis too large to keep resident: hoisted-mean fallback, set axis
    # tiled on a sublane-aligned cdiv grid (partial last block is masked).
    def hoisted_bytes(tn):
        return (2 * tn * td * itemsize + 2 * tn * te * itemsize + tn * te * 4
                + n_wbuf * td * te * itemsize + 2 * te * 4)

    tn = max(sub, (_TARGET_ROWS // sub) * sub)
    while tn > sub and hoisted_bytes(tn) > vmem_budget:
        tn -= sub
    if tn >= N:
        tn = N
    return dict(mode="hoisted", bt=1, tn=tn, td=td, te=te)


# ---------------------------------------------------------------------------
# Wrappers
# ---------------------------------------------------------------------------

def prepare_perm_eq_mean_params(w_gamma, b_gamma, w_lambda, dtype):
    """One-time parameter prep, hoisted out of the per-call path:
    weights transposed to contraction-major (D, E) layout in the activation
    dtype; bias kept in f32 (added to the f32 accumulator before the cast)."""
    wg_t = jnp.asarray(w_gamma).astype(dtype).T                     # (D, E)
    wl_t = jnp.asarray(w_lambda).astype(dtype).T                    # (D, E)
    b = jnp.asarray(b_gamma).astype(jnp.float32).reshape(1, 1, -1)  # (1, 1, E)
    return wg_t, wl_t, b


def perm_eq_mean_apply(x, wg_t, wl_t, b):
    """x: (B, N, D); wg_t, wl_t: (D, E); b: (1, 1, E) f32."""
    B, N, D = x.shape
    E = wg_t.shape[1]
    out_dtype = x.dtype
    itemsize = jnp.dtype(out_dtype).itemsize

    phys_vmem = _physical_vmem_bytes()
    vmem_budget = int(phys_vmem * 0.45)       # tiles + buffers, with headroom
    vmem_limit = int(phys_vmem * 0.85)        # explicit scoped-VMEM limit

    plan = _plan_tiles(B, N, D, E, itemsize, vmem_budget)
    bt, tn, td, te = plan["bt"], plan["tn"], plan["td"], plan["te"]
    ge, gk = E // te, D // td
    const_w = (ge == 1 and gk == 1)

    cost = pl.CostEstimate(
        flops=2 * B * N * D * E + 2 * B * D * E + 2 * B * N * E,
        transcendentals=0,
        bytes_accessed=(x.size * itemsize + wg_t.size * itemsize
                        + wl_t.size * itemsize + b.size * 4
                        + B * N * E * itemsize))

    if plan["mode"] == "fused":
        gb = B // bt
        if const_w:
            wg_spec = pl.BlockSpec((td, te), lambda bi, ei, ki: (ki, ei),
                                   pipeline_mode=pl.Buffered(1))
            wl_spec = pl.BlockSpec((td, te), lambda bi, ei, ki: (ki, ei),
                                   pipeline_mode=pl.Buffered(1))
        else:
            wg_spec = pl.BlockSpec((td, te), lambda bi, ei, ki: (ki, ei))
            wl_spec = pl.BlockSpec((td, te), lambda bi, ei, ki: (ki, ei))
        return pl.pallas_call(
            _perm_eq_mean_fused_kernel,
            out_shape=jax.ShapeDtypeStruct((B, N, E), out_dtype),
            grid=(gb, ge, gk),
            in_specs=[
                pl.BlockSpec((bt, N, td), lambda bi, ei, ki: (bi, 0, ki)),
                wg_spec,
                wl_spec,
                pl.BlockSpec((1, 1, te), lambda bi, ei, ki: (0, 0, ei)),
            ],
            out_specs=pl.BlockSpec((bt, N, te), lambda bi, ei, ki: (bi, 0, ei)),
            scratch_shapes=[pltpu.VMEM((bt, N, te), jnp.float32)],
            compiler_params=pltpu.CompilerParams(
                dimension_semantics=("parallel", "parallel", "arbitrary"),
                vmem_limit_bytes=vmem_limit),
            cost_estimate=cost,
        )(x, wg_t, wl_t, b)

    # ---- hoisted-mean fallback (set axis too large to keep resident) ----
    # Mean + Lambda matmul in f32 (1/N of the Gamma FLOPs); Gamma bias folded
    # in so the kernel does exactly one broadcast add.
    x_mean = jnp.mean(x.astype(jnp.float32), axis=-2, keepdims=True)   # (B,1,D)
    c = x_mean @ wl_t.astype(jnp.float32) + b                          # (B,1,E)

    gn = pl.cdiv(N, tn)
    if const_w:
        wg_spec = pl.BlockSpec((td, te), lambda bi, ni, ei, ki: (ki, ei),
                               pipeline_mode=pl.Buffered(1))
    else:
        wg_spec = pl.BlockSpec((td, te), lambda bi, ni, ei, ki: (ki, ei))
    return pl.pallas_call(
        _perm_eq_mean_hoisted_kernel,
        out_shape=jax.ShapeDtypeStruct((B, N, E), out_dtype),
        grid=(B, gn, ge, gk),
        in_specs=[
            pl.BlockSpec((1, tn, td), lambda bi, ni, ei, ki: (bi, ni, ki)),
            wg_spec,
            pl.BlockSpec((1, 1, te), lambda bi, ni, ei, ki: (bi, 0, ei)),
        ],
        out_specs=pl.BlockSpec((1, tn, te), lambda bi, ni, ei, ki: (bi, ni, ei)),
        scratch_shapes=[pltpu.VMEM((1, tn, te), jnp.float32)],
        compiler_params=pltpu.CompilerParams(
            dimension_semantics=("parallel", "parallel", "parallel", "arbitrary"),
            vmem_limit_bytes=vmem_limit),
        cost_estimate=cost,
    )(x, wg_t, c)


def perm_eq_mean(x, w_gamma, b_gamma, w_lambda):
    """Convenience wrapper taking PyTorch-layout params: w_*: (E, D), b: (E,)."""
    wg_t, wl_t, b = prepare_perm_eq_mean_params(w_gamma, b_gamma, w_lambda, x.dtype)
    return perm_eq_mean_apply(x, wg_t, wl_t, b)


def perm_eq_mean_ref(x, w_gamma, b_gamma, w_lambda):
    """Pure-JAX reference mirroring the PyTorch forward."""
    x_mean = jnp.mean(x, axis=-2, keepdims=True)
    return x @ w_gamma.T + b_gamma + x_mean @ w_lambda.T


if __name__ == "__main__":
    key = jax.random.PRNGKey(0)
    k_x, k_wg, k_bg, k_wl = jax.random.split(key, 4)

    B, N, in_dim, out_dim = 2, 8, 32, 32

    x = jax.random.normal(k_x, (B, N, in_dim), dtype=jnp.float32)

    # Deterministic parameter init (PyTorch Linear-style uniform bound).
    bound = 1.0 / (in_dim ** 0.5)
    w_gamma = jax.random.uniform(k_wg, (out_dim, in_dim), jnp.float32, -bound, bound)
    b_gamma = jax.random.uniform(k_bg, (out_dim,), jnp.float32, -bound, bound)
    w_lambda = jax.random.uniform(k_wl, (out_dim, in_dim), jnp.float32, -bound, bound)

    out = perm_eq_mean(x, w_gamma, b_gamma, w_lambda)
    out = jax.block_until_ready(out)

    ref = perm_eq_mean_ref(x, w_gamma, b_gamma, w_lambda)
    assert out.shape == (B, N, out_dim)
    assert jnp.allclose(out, ref, atol=1e-5, rtol=1e-5), "mismatch vs reference"

    print("KERNEL_OK")
</pallas_src>

<mosaic_0001>
module attributes {stable_mosaic.version = 11 : i64} {
  func.func @_perm_eq_mean_fused_kernel(%arg0: i32, %arg1: i32, %arg2: i32, %arg3: memref<1x8x32xf32, #tpu.memory_space<vmem>>, %arg4: memref<32x32xf32, #tpu.memory_space<vmem>>, %arg5: memref<32x32xf32, #tpu.memory_space<vmem>>, %arg6: memref<1x1x32xf32, #tpu.memory_space<vmem>>, %arg7: memref<1x8x32xf32, #tpu.memory_space<vmem>>, %arg8: memref<1x8x32xf32, #tpu.memory_space<vmem>>) attributes {dimension_semantics = [#tpu.dimension_semantics<parallel>, #tpu.dimension_semantics<parallel>, #tpu.dimension_semantics<arbitrary>], iteration_bounds = array<i64: 2, 1, 1>, scalar_prefetch = 0 : i64, scratch_operands = 1 : i64, tpu.core_type = #tpu.core_type<tc>, window_params = [{transform_indices = @transform_0, window_bounds = array<i64: 1, 8, 32>}, {pipeline_mode = #tpu.pipeline_mode<synchronous>, transform_indices = @transform_1, window_bounds = array<i64: 32, 32>}, {pipeline_mode = #tpu.pipeline_mode<synchronous>, transform_indices = @transform_2, window_bounds = array<i64: 32, 32>}, {transform_indices = @transform_3, window_bounds = array<i64: 1, 1, 32>}, {transform_indices = @transform_4, window_bounds = array<i64: 1, 8, 32>}]} {
    %c0_i32 = arith.constant 0 : i32
    %0 = arith.cmpi eq, %arg2, %c0_i32 : i32
    %1 = arith.extui %0 : i1 to i32
    %c0_i32_0 = arith.constant 0 : i32
    %2 = arith.cmpi ne, %1, %c0_i32_0 : i32
    scf.if %2 {
      %cst_18 = arith.constant 0.000000e+00 : f32
      %20 = vector.broadcast %cst_18 : f32 to vector<1x8x32xf32>
      %c0_19 = arith.constant 0 : index
      %c0_20 = arith.constant 0 : index
      %c0_21 = arith.constant 0 : index
      %21 = vector.load %arg8[%c0_19, %c0_20, %c0_21] : memref<1x8x32xf32, #tpu.memory_space<vmem>>, vector<1x8x32xf32>
      tpu.vector_store %arg8[%c0_19, %c0_20, %c0_21], %20 {strides = array<i32>} : memref<1x8x32xf32, #tpu.memory_space<vmem>>, vector<1x8x32xf32>,
    } else {
    }
    %c0 = arith.constant 0 : index
    %c0_1 = arith.constant 0 : index
    %c0_2 = arith.constant 0 : index
    %3 = vector.load %arg3[%c0, %c0_1, %c0_2] : memref<1x8x32xf32, #tpu.memory_space<vmem>>, vector<1x8x32xf32>
    %c0_3 = arith.constant 0 : index
    %c0_4 = arith.constant 0 : index
    %4 = vector.load %arg4[%c0_3, %c0_4] : memref<32x32xf32, #tpu.memory_space<vmem>>, vector<32x32xf32>
    %cst = arith.constant dense<0.000000e+00> : vector<1x8x32xf32>
    %5 = tpu.matmul %3, %4, %cst {dimension_numbers = #tpu.dot_dimension_numbers<[2], [0], [0, 1], [1], [0, 0, 0, 1, 1, 1], [], []>} : vector<1x8x32xf32>, vector<32x32xf32>, vector<1x8x32xf32> -> vector<1x8x32xf32>
    %cst_5 = arith.constant dense<0.000000e+00> : vector<1x32xf32>
    %6 = vector.multi_reduction <add>, %3, %cst_5 [1] : vector<1x8x32xf32> to vector<1x32xf32>
    %cst_6 = arith.constant 8.000000e+00 : f32
    %7 = vector.broadcast %cst_6 : f32 to vector<1x32xf32>
    %8 = arith.divf %6, %7 : vector<1x32xf32>
    %c0_7 = arith.constant 0 : index
    %c0_8 = arith.constant 0 : index
    %9 = vector.load %arg5[%c0_7, %c0_8] : memref<32x32xf32, #tpu.memory_space<vmem>>, vector<32x32xf32>
    %cst_9 = arith.constant dense<0.000000e+00> : vector<1x32xf32>
    %10 = tpu.matmul %8, %9, %cst_9 {dimension_numbers = #tpu.dot_dimension_numbers<[1], [0], [0], [1], [0, 0, 1, 1], [], []>} : vector<1x32xf32>, vector<32x32xf32>, vector<1x32xf32> -> vector<1x32xf32>
    %c0_10 = arith.constant 0 : index
    %c0_11 = arith.constant 0 : index
    %c0_12 = arith.constant 0 : index
    %11 = vector.load %arg8[%c0_10, %c0_11, %c0_12] : memref<1x8x32xf32, #tpu.memory_space<vmem>>, vector<1x8x32xf32>
    %12 = vector.shape_cast %10 : vector<1x32xf32> to vector<1x1x32xf32>
    %13 = vector.broadcast %12 : vector<1x1x32xf32> to vector<1x8x32xf32>
    %14 = arith.addf %5, %13 : vector<1x8x32xf32>
    %15 = arith.addf %11, %14 : vector<1x8x32xf32>
    %c0_13 = arith.constant 0 : index
    %c0_14 = arith.constant 0 : index
    %c0_15 = arith.constant 0 : index
    %16 = vector.load %arg8[%c0_13, %c0_14, %c0_15] : memref<1x8x32xf32, #tpu.memory_space<vmem>>, vector<1x8x32xf32>
    tpu.vector_store %arg8[%c0_13, %c0_14, %c0_15], %15 {strides = array<i32>} : memref<1x8x32xf32, #tpu.memory_space<vmem>>, vector<1x8x32xf32>,
    %c0_i32_16 = arith.constant 0 : i32
    %17 = arith.cmpi eq, %arg2, %c0_i32_16 : i32
    %18 = arith.extui %17 : i1 to i32
    %c0_i32_17 = arith.constant 0 : i32
    %19 = arith.cmpi ne, %18, %c0_i32_17 : i32
    scf.if %19 {
      %c0_18 = arith.constant 0 : index
      %c0_19 = arith.constant 0 : index
      %c0_20 = arith.constant 0 : index
      %20 = vector.load %arg8[%c0_18, %c0_19, %c0_20] : memref<1x8x32xf32, #tpu.memory_space<vmem>>, vector<1x8x32xf32>
      %c0_21 = arith.constant 0 : index
      %c0_22 = arith.constant 0 : index
      %c0_23 = arith.constant 0 : index
      %21 = vector.load %arg6[%c0_21, %c0_22, %c0_23] : memref<1x1x32xf32, #tpu.memory_space<vmem>>, vector<1x1x32xf32>
      %22 = vector.broadcast %21 : vector<1x1x32xf32> to vector<1x8x32xf32>
      %23 = arith.addf %20, %22 : vector<1x8x32xf32>
      %c0_24 = arith.constant 0 : index
      %c0_25 = arith.constant 0 : index
      %c0_26 = arith.constant 0 : index
      %24 = vector.load %arg7[%c0_24, %c0_25, %c0_26] : memref<1x8x32xf32, #tpu.memory_space<vmem>>, vector<1x8x32xf32>
      tpu.vector_store %arg7[%c0_24, %c0_25, %c0_26], %23 {strides = array<i32>} : memref<1x8x32xf32, #tpu.memory_space<vmem>>, vector<1x8x32xf32>,
    } else {
    }
    return
  }
  func.func @transform_0(%arg0: i32, %arg1: i32, %arg2: i32) -> (i32, i32, i32) {
    %c0_i32 = arith.constant 0 : i32
    %c0_i32_0 = arith.constant 0 : i32
    return %arg0, %c0_i32, %arg2 : i32, i32, i32
  }
  func.func @transform_1(%arg0: i32, %arg1: i32, %arg2: i32) -> (i32, i32) {
    %c0_i32 = arith.constant 0 : i32
    return %arg2, %arg1 : i32, i32
  }
  func.func @transform_2(%arg0: i32, %arg1: i32, %arg2: i32) -> (i32, i32) {
    %c0_i32 = arith.constant 0 : i32
    return %arg2, %arg1 : i32, i32
  }
  func.func @transform_3(%arg0: i32, %arg1: i32, %arg2: i32) -> (i32, i32, i32) {
    %c0_i32 = arith.constant 0 : i32
    %c0_i32_0 = arith.constant 0 : i32
    %c0_i32_1 = arith.constant 0 : i32
    return %c0_i32, %c0_i32_0, %arg1 : i32, i32, i32
  }
  func.func @transform_4(%arg0: i32, %arg1: i32, %arg2: i32) -> (i32, i32, i32) {
    %c0_i32 = arith.constant 0 : i32
    %c0_i32_0 = arith.constant 0 : i32
    return %arg0, %c0_i32, %arg1 : i32, i32, i32
  }
}

</mosaic_0001>

<llo_original>
// kernel: tpu_custom_call.1
$region0: #{tpu_custom_call.1}
  #allocation0 [shape = 'u32[]', space=smem, size = 0x4, offset = 0x4, fixed_abs, tag = 'smem constant byte address 0x4 - core index']
  #allocation1 [shape = 'u32[144,128]{1,0:T(1,128)}', space=vmem, size = 0x12000, scoped, tag = 'internal scratch']
  #allocation2 [shape = 'f32[1,8,32]{2,1,0:T(8,128)}', space=vmem, size = 0x1000, scoped, tag = 'scratch operand']
  %s0 = inlined_call_operand.hbm [shape: f32[2,8,32], index: 0, kind: input, shape index: {}]
  %s1 = inlined_call_operand.hbm [shape: f32[32,32], index: 1, kind: input, shape index: {}]
  %s2 = inlined_call_operand.hbm [shape: f32[32,32], index: 2, kind: input, shape index: {}]
  %s3 = inlined_call_operand.vmem [shape: f32[1,1,32], index: 3, kind: input, shape index: {}]
  %s4 = inlined_call_operand.hbm [shape: f32[2,8,32], index: 4, kind: output, shape index: {}]
  %s5 = sld [smem:[#allocation0]]
  $region69: #{tpu_custom_call.1} parent=0
    _
  %s7 = ssub.s32 1, %s5
  %s8 = scalar_select 0, %s7, %s5
  $region1: #{tpu_custom_call.1} parent=0
    #allocation3 [shape = 'u8[8192]{0}', space=vmem, size = 0x2000, scoped, tag = 'input window, operand 0']
    #allocation4 [shape = 's32[2]{0}', space=sflag, size = 0x8, scoped, tag = 'scoped memory for tpu_custom_call.1']
    #allocation5 [shape = 's32[2]{0}', space=sflag, size = 0x8, scoped, tag = 'scoped memory for tpu_custom_call.1']
    #allocation6 [shape = 'u8[16384]{0}', space=vmem, size = 0x4000, scoped, tag = 'input window, operand 1, single buffered']
    #allocation7 [shape = 's32[1]{0}', space=sflag, size = 0x4, scoped, tag = 'scoped memory for tpu_custom_call.1']
    #allocation8 [shape = 'u8[16384]{0}', space=vmem, size = 0x4000, scoped, tag = 'input window, operand 2, single buffered']
    #allocation9 [shape = 'u8[8192]{0}', space=vmem, size = 0x2000, scoped, tag = 'output window, operand 0']
    %9 = vsyncpa [#allocation4], 0
    %s10 = scalar_lea.sflag [#allocation4], 1
    %11 = vsyncpa %s10, 0
    %12 = vsyncpa [#allocation7], 0
    %13 = vsyncpa [#allocation5], 0
    %s14 = scalar_lea.sflag [#allocation5], 1
    %15 = vsyncpa %s14, 0
    loop: start=0, step=1, limit=4
    $region2: #{tpu_custom_call.1} parent=1 // loop_pre_header
      _
    $region3: #{tpu_custom_call.1} parent=1 // loop_header
      %s17 = sphi 0, %s21
      %p18 = scmp.ge.s32.totalorder %s17, 4
      %s24 = sphi 0, %s43
      %s25 = sphi 0, %s39
      %s26 = sphi 0, %s35
      %s27 = sphi 0, %s24
      %s28 = sphi 0, %s25
      %s29 = sphi 0, %s26
      %s30 = sphi 0, %s27
      %s31 = sphi 0, %s28
      %s32 = sphi 0, %s29
      %s48 = sphi 0, %s50
      %s51 = sphi 0, %s48
      %s52 = sphi 0, %s51
      %s68 = sphi 0, %s52
      %s76 = sphi 0, %s78
      %s79 = sphi 0, %s76
      %s80 = sphi 0, %s79
      %s96 = sphi 0, %s80
      %s104 = sphi 0, %s106
      %s107 = sphi 0, %s104
      %s108 = sphi 0, %s107
      %s124 = sphi 0, %s108
      %s130 = sphi 0, %s132
      %s133 = sphi 0, %s130
      %s134 = sphi 0, %s133
      %s150 = sphi 0, %s134
      %s158 = sphi 0, %s160
      %s161 = sphi 0, %s158
      %s162 = sphi 0, %s161
      %s178 = sphi 0, %s162
    $region4: #{tpu_custom_call.1} parent=1 // loop_header_branch
      %20 = sbr.rel (%p18) target = $region8
    $region5: #{tpu_custom_call.1} parent=1 // loop_body
      %s22 = ssub.s32 %s17, 1
      %s23 = ssub.s32 %s17, 2
      %s33 = sadd.s32 1, %s26
      %p34 = scmp.ge.s32.totalorder %s33, 1
      %s35 = scalar_select %p34, 0, %s33
      %s36 = sadd.s32 1, %s25
      %s37 = scalar_select %p34, %s36, %s25
      %p38 = scmp.ge.s32.totalorder %s37, 1
      %s39 = scalar_select %p38, 0, %s37
      %s40 = sadd.s32 1, %s24
      %s41 = scalar_select %p38, %s40, %s24
      %p42 = scmp.ge.s32.totalorder %s41, 2
      %s43 = scalar_select %p42, 0, %s41
      %s44 = ssub.s32 %s24, %s43
      %s45 = ssub.s32 %s26, %s35
      %s46 = sor.u32 %s44, %s45
      %p47 = scmp.eq.s32.totalorder %s46, 0
      %s49 = sadd.s32 %s48, 1
      %s50 = scalar_select %p47, %s48, %s49
      %p53 = pneg %p47
      %p54 = scmp.eq.s32.totalorder %s17, 1
      %p55 = por %p53, %p54
      %p56 = scmp.ne.s32.totalorder %s48, %s51
      %p57 = scmp.eq.s32.totalorder %s17, 0
      %p58 = por %p56, %p57
      %p59 = scmp.ne.s32.totalorder %s48, %s51
      %p60 = scmp.eq.s32.totalorder %s22, 1
      %p61 = por %p59, %p60
      %p62 = scmp.ne.s32.totalorder %s51, %s52
      %p63 = scmp.eq.s32.totalorder %s22, 0
      %p64 = por %p62, %p63
      %p65 = scmp.ne.s32.totalorder %s51, %s52
      %p66 = scmp.eq.s32.totalorder %s23, 1
      %p67 = por %p65, %p66
      %p69 = scmp.ne.s32.totalorder %s52, %s68
      %p70 = scmp.eq.s32.totalorder %s23, 0
      %p71 = por %p69, %p70
      %s72 = ssub.s32 %s26, %s35
      %s73 = ssub.s32 %s25, %s39
      %s74 = sor.u32 %s72, %s73
      %p75 = scmp.eq.s32.totalorder %s74, 0
      %s77 = sadd.s32 %s76, 1
      %s78 = scalar_select %p75, %s76, %s77
      %p81 = pneg %p75
      %p82 = scmp.eq.s32.totalorder %s17, 1
      %p83 = por %p81, %p82
      %p84 = scmp.ne.s32.totalorder %s76, %s79
      %p85 = scmp.eq.s32.totalorder %s17, 0
      %p86 = por %p84, %p85
      %p87 = scmp.ne.s32.totalorder %s76, %s79
      %p88 = scmp.eq.s32.totalorder %s22, 1
      %p89 = por %p87, %p88
      %p90 = scmp.ne.s32.totalorder %s79, %s80
      %p91 = scmp.eq.s32.totalorder %s22, 0
      %p92 = por %p90, %p91
      %p93 = scmp.ne.s32.totalorder %s79, %s80
      %p94 = scmp.eq.s32.totalorder %s23, 1
      %p95 = por %p93, %p94
      %p97 = scmp.ne.s32.totalorder %s80, %s96
      %p98 = scmp.eq.s32.totalorder %s23, 0
      %p99 = por %p97, %p98
      %s100 = ssub.s32 %s26, %s35
      %s101 = ssub.s32 %s25, %s39
      %s102 = sor.u32 %s100, %s101
      %p103 = scmp.eq.s32.totalorder %s102, 0
      %s105 = sadd.s32 %s104, 1
      %s106 = scalar_select %p103, %s104, %s105
      %p109 = pneg %p103
      %p110 = scmp.eq.s32.totalorder %s17, 1
      %p111 = por %p109, %p110
      %p112 = scmp.ne.s32.totalorder %s104, %s107
      %p113 = scmp.eq.s32.totalorder %s17, 0
      %p114 = por %p112, %p113
      %p115 = scmp.ne.s32.totalorder %s104, %s107
      %p116 = scmp.eq.s32.totalorder %s22, 1
      %p117 = por %p115, %p116
      %p118 = scmp.ne.s32.totalorder %s107, %s108
      %p119 = scmp.eq.s32.totalorder %s22, 0
      %p120 = por %p118, %p119
      %p121 = scmp.ne.s32.totalorder %s107, %s108
      %p122 = scmp.eq.s32.totalorder %s23, 1
      %p123 = por %p121, %p122
      %p125 = scmp.ne.s32.totalorder %s108, %s124
      %p126 = scmp.eq.s32.totalorder %s23, 0
      %p127 = por %p125, %p126
      %s128 = ssub.s32 %s25, %s39
      %p129 = scmp.eq.s32.totalorder %s128, 0
      %s131 = sadd.s32 %s130, 1
      %s132 = scalar_select %p129, %s130, %s131
      %p135 = pneg %p129
      %p136 = scmp.eq.s32.totalorder %s17, 1
      %p137 = por %p135, %p136
      %p138 = scmp.ne.s32.totalorder %s130, %s133
      %p139 = scmp.eq.s32.totalorder %s17, 0
      %p140 = por %p138, %p139
      %p141 = scmp.ne.s32.totalorder %s130, %s133
      %p142 = scmp.eq.s32.totalorder %s22, 1
      %p143 = por %p141, %p142
      %p144 = scmp.ne.s32.totalorder %s133, %s134
      %p145 = scmp.eq.s32.totalorder %s22, 0
      %p146 = por %p144, %p145
      %p147 = scmp.ne.s32.totalorder %s133, %s134
      %p148 = scmp.eq.s32.totalorder %s23, 1
      %p149 = por %p147, %p148
      %p151 = scmp.ne.s32.totalorder %s134, %s150
      %p152 = scmp.eq.s32.totalorder %s23, 0
      %p153 = por %p151, %p152
      %s154 = ssub.s32 %s24, %s43
      %s155 = ssub.s32 %s25, %s39
      %s156 = sor.u32 %s154, %s155
      %p157 = scmp.eq.s32.totalorder %s156, 0
      %s159 = sadd.s32 %s158, 1
      %s160 = scalar_select %p157, %s158, %s159
      %p163 = pneg %p157
      %p164 = scmp.eq.s32.totalorder %s17, 1
      %p165 = por %p163, %p164
      %p166 = scmp.ne.s32.totalorder %s158, %s161
      %p167 = scmp.eq.s32.totalorder %s17, 0
      %p168 = por %p166, %p167
      %p169 = scmp.ne.s32.totalorder %s158, %s161
      %p170 = scmp.eq.s32.totalorder %s22, 1
      %p171 = por %p169, %p170
      %p172 = scmp.ne.s32.totalorder %s161, %s162
      %p173 = scmp.eq.s32.totalorder %s22, 0
      %p174 = por %p172, %p173
      %p175 = scmp.ne.s32.totalorder %s161, %s162
      %p176 = scmp.eq.s32.totalorder %s23, 1
      %p177 = por %p175, %p176
      %p179 = scmp.ne.s32.totalorder %s162, %s178
      %p180 = scmp.eq.s32.totalorder %s23, 0
      %p181 = por %p179, %p180
      %p182 = scmp.le.s32.totalorder 1, %s17
      %p183 = scmp.lt.s32.totalorder %s17, 3
      %p184 = pnand %p182, %p183
      %p185 = pneg %p184
      // Predicated region
      $region9: #{tpu_custom_call.1} parent=5 // pred_check
        _
      $region10: #{tpu_custom_call.1} parent=5 // pred_check_branch
        %187 = sbr.rel (%p184) target = $region12
      $region11: #{tpu_custom_call.1} parent=5 // pred_region
        %s188 = ssub.s32 %s17, 1
        // Predicated region
        $region13: #{tpu_custom_call.1} parent=11 // pred_check
          %p189 = pneg %p92
        $region14: #{tpu_custom_call.1} parent=11 // pred_check_branch
          %191 = sbr.rel (%p189) target = $region16
        $region15: #{tpu_custom_call.1} parent=11 // pred_region
          %s192 = smul.u32 4, %s29
          %s194 = ssub.s32 512, 512
          %195 = vsyncadd [#allocation7], %s194
          %s196 = sadd.s32 %s28, %s192
          %s197 = smul.addr %s196, 128
          %s198 = scalar_lea.hbm %s1, %s197
          %s199 = sshll.u32 [#allocation6], 4
          %s200 = int_to_ptr.vmem [resolvable:$true] %s199
          %205 = dma.hbm_to_vmem [thread:$0]  %s198, 512, %s200, [#allocation7], 128, 128, 8
        $region16: #{tpu_custom_call.1} parent=11 // pred_fallthru
          _
        // Predicated region
        $region17: #{tpu_custom_call.1} parent=11 // pred_check
          %p206 = pneg %p120
        $region18: #{tpu_custom_call.1} parent=11 // pred_check_branch
          %208 = sbr.rel (%p206) target = $region20
        $region19: #{tpu_custom_call.1} parent=11 // pred_region
          %s209 = smul.u32 4, %s29
          %s211 = ssub.s32 512, 512
          %212 = vsyncadd [#allocation7], %s211
          %s213 = sadd.s32 %s28, %s209
          %s214 = smul.addr %s213, 128
          %s215 = scalar_lea.hbm %s2, %s214
          %s216 = sshll.u32 [#allocation8], 4
          %s217 = int_to_ptr.vmem [resolvable:$true] %s216
          %222 = dma.hbm_to_vmem [thread:$0]  %s215, 512, %s217, [#allocation7], 128, 128, 8
        $region20: #{tpu_custom_call.1} parent=11 // pred_fallthru
          _
        // Predicated region
        $region21: #{tpu_custom_call.1} parent=11 // pred_check
          %p223 = pneg %p146
        $region22: #{tpu_custom_call.1} parent=11 // pred_check_branch
          %225 = sbr.rel (%p223) target = $region24
        $region23: #{tpu_custom_call.1} parent=11 // pred_region
          %p226 = scmp.lt.s32.totalorder %s28, 0
          %s227 = scalar_select %p226, %s28, 0
          %s228 = scalar_lea.vmem %s3, %s227
        $region24: #{tpu_custom_call.1} parent=11 // pred_fallthru
          _
      $region12: #{tpu_custom_call.1} parent=5 // pred_fallthru
        _
      %p229 = scmp.lt.s32.totalorder %s17, 2
      // Predicated region
      $region25: #{tpu_custom_call.1} parent=5 // pred_check
        %p230 = pneg %p229
      $region26: #{tpu_custom_call.1} parent=5 // pred_check_branch
        %232 = sbr.rel (%p230) target = $region28
      $region27: #{tpu_custom_call.1} parent=5 // pred_region
        // Predicated region
        $region29: #{tpu_custom_call.1} parent=27 // pred_check
          %p233 = pneg %p58
        $region30: #{tpu_custom_call.1} parent=27 // pred_check_branch
          %235 = sbr.rel (%p233) target = $region32
        $region31: #{tpu_custom_call.1} parent=27 // pred_region
          %s236 = sand.u32 %s48, 1
          %s237 = scalar_lea.sflag [#allocation4], %s236
          %s238 = sand.u32 %s48, 1
          %s239 = smul.addr %s238, 8
          %s240 = scalar_lea.vmem [#allocation3], %s239
          %s242 = ssub.s32 128, 128
          %243 = vsyncadd %s237, %s242
          %s244 = sadd.s32 %s26, %s24
          %s245 = smul.addr %s244, 128
          %s246 = scalar_lea.hbm %s0, %s245
          %s248 = sshll.u32 %s240, 4
          %s249 = int_to_ptr.vmem [resolvable:$true] %s248
          %251 = dma.hbm_to_vmem [thread:$0]  %s246, 128, %s249, %s237
        $region32: #{tpu_custom_call.1} parent=27 // pred_fallthru
          _
      $region28: #{tpu_custom_call.1} parent=5 // pred_fallthru
        _
      %p252 = scmp.le.s32.totalorder 1, %s17
      %p253 = scmp.lt.s32.totalorder %s17, 3
      %p254 = pnand %p252, %p253
      %p255 = pneg %p254
      // Predicated region
      $region33: #{tpu_custom_call.1} parent=5 // pred_check
        _
      $region34: #{tpu_custom_call.1} parent=5 // pred_check_branch
        %257 = sbr.rel (%p254) target = $region36
      $region35: #{tpu_custom_call.1} parent=5 // pred_region
        %s258 = ssub.s32 %s17, 1
        %s259 = sand.u32 %s51, 1
        %s260 = scalar_lea.sflag [#allocation4], %s259
        %s261 = sand.u32 %s51, 1
        %s262 = smul.addr %s261, 8
        %s263 = scalar_lea.vmem [#allocation3], %s262
        // Predicated region
        $region37: #{tpu_custom_call.1} parent=35 // pred_check
          %p264 = pneg %p64
        $region38: #{tpu_custom_call.1} parent=35 // pred_check_branch
          %266 = sbr.rel (%p264) target = $region40
        $region39: #{tpu_custom_call.1} parent=35 // pred_region
          %267 = dma.done %s260, 128
        $region40: #{tpu_custom_call.1} parent=35 // pred_fallthru
          _
        // Predicated region
        $region41: #{tpu_custom_call.1} parent=35 // pred_check
          %p268 = pneg %p92
        $region42: #{tpu_custom_call.1} parent=35 // pred_check_branch
          %270 = sbr.rel (%p268) target = $region44
        $region43: #{tpu_custom_call.1} parent=35 // pred_region
          %271 = dma.done [#allocation7], 512
        $region44: #{tpu_custom_call.1} parent=35 // pred_fallthru
          _
        // Predicated region
        $region45: #{tpu_custom_call.1} parent=35 // pred_check
          %p272 = pneg %p120
        $region46: #{tpu_custom_call.1} parent=35 // pred_check_branch
          %274 = sbr.rel (%p272) target = $region48
        $region47: #{tpu_custom_call.1} parent=35 // pred_region
          %275 = dma.done [#allocation7], 512
        $region48: #{tpu_custom_call.1} parent=35 // pred_fallthru
          _
        %s276 = sand.u32 %s51, 1
        %s277 = scalar_lea.sflag [#allocation4], %s276
        %s278 = sand.u32 %s51, 1
        %s279 = smul.addr %s278, 8
        %s280 = scalar_lea.vmem [#allocation3], %s279
        %p281 = pneg %p64
        %p282 = pneg %p61
        %p283 = pneg %p92
        %p284 = pneg %p89
        %p285 = pneg %p120
        %p286 = pneg %p117
        %p287 = scmp.lt.s32.totalorder %s28, 0
        %s288 = scalar_select %p287, %s28, 0
        %s289 = scalar_lea.vmem %s3, %s288
        %p290 = pneg %p146
        %p291 = pneg %p143
        %p292 = pneg %p174
        %p293 = pneg %p171
        %s294 = sand.u32 %s161, 1
        %s295 = scalar_lea.sflag [#allocation5], %s294
        %s296 = sand.u32 %s161, 1
        %s297 = smul.addr %s296, 8
        %s298 = scalar_lea.vmem [#allocation9], %s297
        %s299 = smul.u32 4, %s29
        %s300 = smul.u32 4, %s29
        %p301 = scmp.lt.s32.totalorder %s28, 0
        %s302 = scalar_select %p301, %s28, 0
        %s303 = scalar_lea.vmem %s3, %s302
        %p304 = scmp.eq.s32.totalorder %s29, 0
        // Predicated region
        $region49: #{tpu_custom_call.1} parent=35 // pred_check
          %p305 = pneg %p304
        $region50: #{tpu_custom_call.1} parent=35 // pred_check_branch
          %307 = sbr.rel (%p305) target = $region52
        $region51: #{tpu_custom_call.1} parent=35 // pred_region
          %vm308 = vcmask 261120
          %309 = vst.msk [vmem:[#allocation2] sm:$0xff] %vm308, 0.0
        $region52: #{tpu_custom_call.1} parent=35 // pred_fallthru
          _
        %v310 = vld [vmem:[%s263] sm:$0xff]
        %v311 = vld [vmem:[#allocation6] sm:$0xff]
        %v312 = vld [vmem:[#allocation6 + $0x8] sm:$0xff]
        %v313 = vld [vmem:[#allocation6 + $0x10] sm:$0xff]
        %v314 = vld [vmem:[#allocation6 + $0x18] sm:$0xff]
        %vm315 = vcmask 261120
        %v316 = vsel %vm315, %v310, 0.0
        %v317 = vrot.slane %v316, 4
        %v318 = vadd.f32 %v316, %v317
        %v319 = vrot.slane %v318, 2
        %v320 = vadd.f32 %v318, %v319
        %v321 = vrot.slane %v320, 1
        %v322 = vadd.f32 %v320, %v321
        %v323 = vrcp.pop 8.0
        %v324 = vmul.f32 %v322, %v323
        %v325 = vld [vmem:[#allocation8] sm:$0xff]
        %v326 = vld [vmem:[#allocation8 + $0x8] sm:$0xff]
        %v327 = vld [vmem:[#allocation8 + $0x10] sm:$0xff]
        %v328 = vld [vmem:[#allocation8 + $0x18] sm:$0xff]
        %v330 = vsel %vm315, %v324, 0
        %332 = vmatprep.subr.mxu0 0.0
        %333 = vmatpush1.msra.mxu0 %v325
        %334 = vmatprep.subr.mxu0 0.0
        %335 = vmatpush1.msra.mxu0 %v326
        %336 = vmatprep.subr.mxu0 0.0
        %337 = vmatpush1.msra.mxu0 %v327
        %338 = vmatprep.subr.mxu0 0.0
        %339 = vmatpush1.msra.mxu0 %v328
        %340 = vmatprep.subr.mxu0 0.0
        %341 = vmatpush1.msra.mxu0 0.0
        %342 = vmatprep.subr.mxu0 0.0
        %343 = vmatpush1.msra.mxu0 0.0
        %344 = vmatprep.subr.mxu0 0.0
        %345 = vmatpush1.msra.mxu0 0.0
        %346 = vmatprep.subr.mxu0 0.0
        %347 = vmatpush1.msra.mxu0 0.0
        %348 = vmatprep.subr.mxu0 0.0
        %349 = vmatpush1.msra.mxu0 0.0
        %350 = vmatprep.subr.mxu0 0.0
        %351 = vmatpush1.msra.mxu0 0.0
        %352 = vmatprep.subr.mxu0 0.0
        %353 = vmatpush1.msra.mxu0 0.0
        %354 = vmatprep.subr.mxu0 0.0
        %355 = vmatpush1.msra.mxu0 0.0
        %356 = vmatprep.subr.mxu0 0.0
        %357 = vmatpush1.msra.mxu0 0.0
        %358 = vmatprep.subr.mxu0 0.0
        %359 = vmatpush1.msra.mxu0 0.0
        %360 = vmatprep.subr.mxu0 0.0
        %361 = vmatpush1.msra.mxu0 0.0
        %362 = vmatprep.subr.mxu0 0.0
        %363 = vmatpush1.msra.mxu0 0.0
        %364 = vmatprep.subr.mxu0 0.0
        %365 = vmatpush1.msra.mxu0 0.0
        %366 = vmatprep.subr.mxu0 0.0
        %367 = vmatpush1.msra.mxu0 0.0
        %368 = vmatprep.subr.mxu0 0.0
        %369 = vmatpush1.msra.mxu0 0.0
        %370 = vmatprep.subr.mxu0 0.0
        %371 = vmatpush1.msra.mxu0 0.0
        %372 = vmatprep.subr.mxu0 0.0
        %373 = vmatpush1.msra.mxu0 0.0
        %374 = vmatprep.subr.mxu0 0.0
        %375 = vmatpush1.msra.mxu0 0.0
        %376 = vmatprep.subr.mxu0 0.0
        %377 = vmatpush1.msra.mxu0 0.0
        %378 = vmatprep.subr.mxu0 0.0
        %379 = vmatpush1.msra.mxu0 0.0
        %380 = vmatprep.subr.mxu0 0.0
        %381 = vmatpush1.msra.mxu0 0.0
        %382 = vmatprep.subr.mxu0 0.0
        %383 = vmatpush1.msra.mxu0 0.0
        %384 = vmatprep.subr.mxu0 0.0
        %385 = vmatpush1.msra.mxu0 0.0
        %386 = vmatprep.subr.mxu0 0.0
        %387 = vmatpush1.msra.mxu0 0.0
        %388 = vmatprep.subr.mxu0 0.0
        %389 = vmatpush1.msra.mxu0 0.0
        %390 = vmatprep.subr.mxu0 0.0
        %391 = vmatpush1.msra.mxu0 0.0
        %392 = vmatprep.subr.mxu0 0.0
        %393 = vmatpush1.msra.mxu0 0.0
        %394 = vmatprep.subr.mxu0 0.0
        %395 = vmatpush1.msra.mxu0 0.0
        %396 = vmatprep.mubr.f32.mxu0 0.0
        %397 = vmatmul.mubr.f32.gmra.mrb[0].mxu0 %v330
        %v398 = vpop.f32.mrb[0].mxu0
        %v399 = vadd.f32 0.0, %v398
        %v400 = vpop.f32.mrb[0].mxu0
        %401 = vdwg.mxu0
        %v402 = vld [vmem:[#allocation2] sm:$0xff]
        %v403 = vlaneseq
        %v404 = vshrl.u32 %v403, 7
        %v405 = vsub.s32 0, %v404
        %v406 = vrot.slane %v399, %v405
        %v408 = vsel %vm315, %v310, 0
        %410 = vmatprep.subr.mxu0 0.0
        %411 = vmatpush1.msra.mxu0 %v311
        %412 = vmatprep.subr.mxu0 0.0
        %413 = vmatpush1.msra.mxu0 %v312
        %414 = vmatprep.subr.mxu0 0.0
        %415 = vmatpush1.msra.mxu0 %v313
        %416 = vmatprep.subr.mxu0 0.0
        %417 = vmatpush1.msra.mxu0 %v314
        %418 = vmatprep.subr.mxu0 0.0
        %419 = vmatpush1.msra.mxu0 0.0
        %420 = vmatprep.subr.mxu0 0.0
        %421 = vmatpush1.msra.mxu0 0.0
        %422 = vmatprep.subr.mxu0 0.0
        %423 = vmatpush1.msra.mxu0 0.0
        %424 = vmatprep.subr.mxu0 0.0
        %425 = vmatpush1.msra.mxu0 0.0
        %426 = vmatprep.subr.mxu0 0.0
        %427 = vmatpush1.msra.mxu0 0.0
        %428 = vmatprep.subr.mxu0 0.0
        %429 = vmatpush1.msra.mxu0 0.0
        %430 = vmatprep.subr.mxu0 0.0
        %431 = vmatpush1.msra.mxu0 0.0
        %432 = vmatprep.subr.mxu0 0.0
        %433 = vmatpush1.msra.mxu0 0.0
        %434 = vmatprep.subr.mxu0 0.0
        %435 = vmatpush1.msra.mxu0 0.0
        %436 = vmatprep.subr.mxu0 0.0
        %437 = vmatpush1.msra.mxu0 0.0
        %438 = vmatprep.subr.mxu0 0.0
        %439 = vmatpush1.msra.mxu0 0.0
        %440 = vmatprep.subr.mxu0 0.0
        %441 = vmatpush1.msra.mxu0 0.0
        %442 = vmatprep.subr.mxu0 0.0
        %443 = vmatpush1.msra.mxu0 0.0
        %444 = vmatprep.subr.mxu0 0.0
        %445 = vmatpush1.msra.mxu0 0.0
        %446 = vmatprep.subr.mxu0 0.0
        %447 = vmatpush1.msra.mxu0 0.0
        %448 = vmatprep.subr.mxu0 0.0
        %449 = vmatpush1.msra.mxu0 0.0
        %450 = vmatprep.subr.mxu0 0.0
        %451 = vmatpush1.msra.mxu0 0.0
        %452 = vmatprep.subr.mxu0 0.0
        %453 = vmatpush1.msra.mxu0 0.0
        %454 = vmatprep.subr.mxu0 0.0
        %455 = vmatpush1.msra.mxu0 0.0
        %456 = vmatprep.subr.mxu0 0.0
        %457 = vmatpush1.msra.mxu0 0.0
        %458 = vmatprep.subr.mxu0 0.0
        %459 = vmatpush1.msra.mxu0 0.0
        %460 = vmatprep.subr.mxu0 0.0
        %461 = vmatpush1.msra.mxu0 0.0
        %462 = vmatprep.subr.mxu0 0.0
        %463 = vmatpush1.msra.mxu0 0.0
        %464 = vmatprep.subr.mxu0 0.0
        %465 = vmatpush1.msra.mxu0 0.0
        %466 = vmatprep.subr.mxu0 0.0
        %467 = vmatpush1.msra.mxu0 0.0
        %468 = vmatprep.subr.mxu0 0.0
        %469 = vmatpush1.msra.mxu0 0.0
        %470 = vmatprep.subr.mxu0 0.0
        %471 = vmatpush1.msra.mxu0 0.0
        %472 = vmatprep.subr.mxu0 0.0
        %473 = vmatpush1.msra.mxu0 0.0
        %474 = vmatprep.mubr.f32.mxu0 0.0
        %475 = vmatmul.mubr.f32.gmra.mrb[0].mxu0 %v408
        %v476 = vpop.f32.mrb[0].mxu0
        %v477 = vadd.f32 %v406, %v476
        %v478 = vpop.f32.mrb[0].mxu0
        %479 = vdwg.mxu0
        %v480 = vadd.f32 %v402, %v477
        %481 = vst.msk [vmem:[#allocation2] sm:$0xff] %vm315, %v480
        // Predicated region
        $region53: #{tpu_custom_call.1} parent=35 // pred_check
          %p482 = pneg %p304
        $region54: #{tpu_custom_call.1} parent=35 // pred_check_branch
          %484 = sbr.rel (%p482) target = $region56
        $region55: #{tpu_custom_call.1} parent=35 // pred_region
          %v485 = vld [vmem:[#allocation2] sm:$0xff]
          %v486 = vld [vmem:[%s303] sm:$0x1]
          %v488 = vlaneseq
          %v489 = vshrl.u32 %v488, 7
          %v490 = vsub.s32 0, %v489
          %v491 = vrot.slane %v486, %v490
          %v493 = vadd.f32 %v485, %v491
          %494 = vst.msk [vmem:[%s298] sm:$0xff] %vm315, %v493
        $region56: #{tpu_custom_call.1} parent=35 // pred_fallthru
          _
        %s495 = sand.u32 %s161, 1
        %s496 = scalar_lea.sflag [#allocation5], %s495
        %s497 = sand.u32 %s161, 1
        %s498 = smul.addr %s497, 8
        %s499 = scalar_lea.vmem [#allocation9], %s498
        // Predicated region
        $region57: #{tpu_custom_call.1} parent=35 // pred_check
          %p500 = pneg %p171
        $region58: #{tpu_custom_call.1} parent=35 // pred_check_branch
          %502 = sbr.rel (%p500) target = $region60
        $region59: #{tpu_custom_call.1} parent=35 // pred_region
          %s504 = ssub.s32 128, 128
          %505 = vsyncadd %s496, %s504
          %s506 = sadd.s32 %s28, %s27
          %s507 = smul.addr %s506, 128
          %s508 = scalar_lea.hbm %s4, %s507
          %s510 = sshll.u32 %s499, 4
          %s511 = int_to_ptr.vmem [resolvable:$true] %s510
          %513 = dma.vmem_to_hbm [thread:$0]  %s511, 128, %s508, %s496
        $region60: #{tpu_custom_call.1} parent=35 // pred_fallthru
          _
      $region36: #{tpu_custom_call.1} parent=5 // pred_fallthru
        _
      %p514 = scmp.le.s32.totalorder 2, %s17
      // Predicated region
      $region61: #{tpu_custom_call.1} parent=5 // pred_check
        %p515 = pneg %p514
      $region62: #{tpu_custom_call.1} parent=5 // pred_check_branch
        %517 = sbr.rel (%p515) target = $region64
      $region63: #{tpu_custom_call.1} parent=5 // pred_region
        %s518 = ssub.s32 %s17, 2
        // Predicated region
        $region65: #{tpu_custom_call.1} parent=63 // pred_check
          %p519 = pneg %p177
        $region66: #{tpu_custom_call.1} parent=63 // pred_check_branch
          %521 = sbr.rel (%p519) target = $region68
        $region67: #{tpu_custom_call.1} parent=63 // pred_region
          %s522 = sand.u32 %s162, 1
          %s523 = scalar_lea.sflag [#allocation5], %s522
          %s524 = sand.u32 %s162, 1
          %s525 = smul.addr %s524, 8
          %s526 = scalar_lea.vmem [#allocation9], %s525
          %527 = dma.done %s523, 128
        $region68: #{tpu_custom_call.1} parent=63 // pred_fallthru
          _
      $region64: #{tpu_custom_call.1} parent=5 // pred_fallthru
        _
    $region6: #{tpu_custom_call.1} parent=1 // loop_footer
      %s21 = sadd.s32 1, %s17
    $region7: #{tpu_custom_call.1} parent=1 // loop_footer_branch
      %16 = sbr.rel target = $region3
    $region8: #{tpu_custom_call.1} parent=1 // loop_exit
      _
    %528 = vsyncpa [#allocation4], 1
    %s529 = scalar_lea.sflag [#allocation4], 1
    %530 = vsyncpa %s529, 1
    %531 = vsyncpa [#allocation7], 1
    %532 = vsyncpa [#allocation5], 1
    %s533 = scalar_lea.sflag [#allocation5], 1
    %534 = vsyncpa %s533, 1

</llo_original>
